<compile_context>
chip_gen: v7x
topology: tpu7x:2x2x1
jax: 0.10.0
libtpu: 0.0.40
codegen_flags: <defaults>
</compile_context>

<pallas_src>
import functools

import jax
import jax.numpy as jnp
from jax.experimental import pallas as pl
from jax.experimental.pallas import tpu as pltpu

_SUBLANE = 8
_LANE = 128
_NUM_CORES = 2        # leading "parallel" grid axis; uses both TCs on v7x, no-op elsewhere
_TILE_ROWS = 2048     # 2048 x 128 x 4B = 1 MiB per input block; x2 inputs x2 buffers = 4 MiB


def _min_sublane(dtype) -> int:
    """Minimum second-minor granularity for a dtype (sub-32-bit dtypes pack sublanes)."""
    return {4: 8, 2: 16, 1: 32}.get(jnp.dtype(dtype).itemsize, 8)


def _nll_kernel(pos_ref, neg_ref, out_ref, *, eps, tile_rows, blocks_per_core,
                num_blocks, valid_rows_last, has_phantom):
    c = pl.program_id(0)               # core / partial-sum index ("parallel")
    j = pl.program_id(1)               # row-block index within this core ("arbitrary")
    block = c * blocks_per_core + j    # logical row-block id (may overshoot num_blocks)

    # The (8,128) output block doubles as this core's accumulator: its block index
    # depends only on `c`, so it stays VMEM-resident across the whole `j` axis.
    @pl.when(j == 0)
    def _init():
        out_ref[...] = jnp.zeros(out_ref.shape, out_ref.dtype)

    pos = pos_ref[...].astype(jnp.float32)
    neg = neg_ref[...].astype(jnp.float32)
    # Fused transcendental: -log(p+eps) - log(1-n+eps) == -log((p+eps)*(1-n+eps)).
    # NOTE: eps=1e-15 only matters in f32 when p==0 / n==1 exactly (matches the ref).
    loss = -jnp.log((pos + eps) * (1.0 - neg + eps))   # (tile_rows, 128) f32

    def _accumulate(vals):
        out_ref[...] += vals.reshape(tile_rows // _SUBLANE, _SUBLANE, _LANE).sum(axis=0)

    if valid_rows_last is not None:
        # rows % tile_rows != 0: the last real block's tail rows come from an
        # out-of-bounds DMA (undefined data) -> mask them at row granularity.
        @pl.when(block < num_blocks - 1)
        def _interior():
            _accumulate(loss)

        @pl.when(block == num_blocks - 1)
        def _ragged_last():
            row = jax.lax.broadcasted_iota(jnp.int32, (tile_rows, _LANE), 0)
            _accumulate(jnp.where(row < valid_rows_last, loss, 0.0))
    elif has_phantom:
        # Odd block count: the last core's final step is a clamped re-read of the
        # last block; skip its contribution.
        @pl.when(block < num_blocks)
        def _real():
            _accumulate(loss)
    else:
        _accumulate(loss)


def nll_loss(positive: jax.Array, negative: jax.Array, eps: float = 1e-15,
             tile_rows: int | None = None) -> jax.Array:
    """Pallas-TPU NLLLoss.forward. Returns a scalar f32."""
    assert positive.shape == negative.shape, "positive/negative must match shapes"
    n = positive.size
    assert n > 0

    pos = positive.reshape(-1)
    neg = negative.reshape(-1)

    # Dtype-aware sublane granularity (f32: 8, bf16/f16: 16, int8/fp8: 32 rows).
    sub = max(_min_sublane(pos.dtype), _min_sublane(neg.dtype))
    granularity = sub * _LANE

    # Neutral pad (pos->1, neg->0) to one (sub,128) tile: pad elements contribute
    # exactly 0.0 in f32, so the kernel needs no element-level mask.
    # TODO(synk): for huge N with N % granularity != 0 this still copies both inputs;
    # a prefix-kernel + jnp-tail split would avoid that extra HBM round trip.
    n_pad = pl.cdiv(n, granularity) * granularity
    if n_pad != n:
        pos = jnp.pad(pos, (0, n_pad - n), constant_values=1.0)
        neg = jnp.pad(neg, (0, n_pad - n), constant_values=0.0)

    rows = n_pad // _LANE
    pos_2d = pos.reshape(rows, _LANE)
    neg_2d = neg.reshape(rows, _LANE)

    tr = min(tile_rows if tile_rows is not None else _TILE_ROWS, rows)
    assert tr % sub == 0, f"tile_rows must be a multiple of {sub} for {pos.dtype}/{neg.dtype}"

    num_blocks = pl.cdiv(rows, tr)
    blocks_per_core = pl.cdiv(num_blocks, _NUM_CORES)
    has_phantom = blocks_per_core * _NUM_CORES != num_blocks
    last_rows = rows - (num_blocks - 1) * tr
    valid_rows_last = None if last_rows == tr else last_rows

    def in_map(c, j):
        # Clamp so a phantom step (odd block count) never points outside the array.
        return (jnp.minimum(c * blocks_per_core + j, num_blocks - 1), 0)

    kernel = functools.partial(
        _nll_kernel, eps=float(eps), tile_rows=tr, blocks_per_core=blocks_per_core,
        num_blocks=num_blocks, valid_rows_last=valid_rows_last, has_phantom=has_phantom)

    partials = pl.pallas_call(
        kernel,
        out_shape=jax.ShapeDtypeStruct((_NUM_CORES * _SUBLANE, _LANE), jnp.float32),
        grid_spec=pltpu.PrefetchScalarGridSpec(
            num_scalar_prefetch=0,
            grid=(_NUM_CORES, blocks_per_core),
            in_specs=[
                pl.BlockSpec((tr, _LANE), in_map),
                pl.BlockSpec((tr, _LANE), in_map),
            ],
            out_specs=pl.BlockSpec((_SUBLANE, _LANE), lambda c, j: (c, 0)),
        ),
        compiler_params=pltpu.CompilerParams(
            dimension_semantics=("parallel", "arbitrary")),
    )(pos_2d, neg_2d)

    # Final cross-lane reduce + 1/n scale on the tiny (16,128) partial-sum array.
    # NOTE: per-lane f32 accumulation; for n >~ 1e8 consider two-level accumulation.
    return jnp.sum(partials) * jnp.float32(1.0 / n)


def nll_loss_ref(positive, negative, eps=1e-15):
    pos_loss = -jnp.log(positive.astype(jnp.float32) + eps).mean()
    neg_loss = -jnp.log(1.0 - negative.astype(jnp.float32) + eps).mean()
    return pos_loss + neg_loss


if __name__ == "__main__":
    key = jax.random.PRNGKey(0)
    k1, k2, k3, k4, k5, k6 = jax.random.split(key, 6)

    # Docstring-scale case: 1-D vectors of length 10 (single block, padded tile).
    n = 10
    positive = jax.nn.sigmoid(jax.random.normal(k1, (n,), dtype=jnp.float32))
    negative = jax.nn.sigmoid(jax.random.normal(k2, (n,), dtype=jnp.float32))
    loss = nll_loss(positive, negative)
    jax.block_until_ready(loss)
    ref = nll_loss_ref(positive, negative)
    assert jnp.allclose(loss, ref, rtol=1e-4, atol=1e-5), (loss, ref)

    # Multi-block + ragged last block + both rows of the "parallel" axis.
    n2 = 3000
    pos2 = jax.nn.sigmoid(jax.random.normal(k3, (n2,), dtype=jnp.float32))
    neg2 = jax.nn.sigmoid(jax.random.normal(k4, (n2,), dtype=jnp.float32))
    loss2 = nll_loss(pos2, neg2, tile_rows=16)
    jax.block_until_ready(loss2)
    ref2 = nll_loss_ref(pos2, neg2)
    assert jnp.allclose(loss2, ref2, rtol=1e-4, atol=1e-5), (loss2, ref2)

    # bf16 inputs (native-dtype DMA, f32 math in-kernel), ragged last block.
    n3 = 5000
    pos3 = jax.nn.sigmoid(jax.random.normal(k5, (n3,), dtype=jnp.float32)).astype(jnp.bfloat16)
    neg3 = jax.nn.sigmoid(jax.random.normal(k6, (n3,), dtype=jnp.float32)).astype(jnp.bfloat16)
    loss3 = nll_loss(pos3, neg3, tile_rows=32)
    jax.block_until_ready(loss3)
    ref3 = nll_loss_ref(pos3, neg3)
    assert jnp.allclose(loss3, ref3, rtol=1e-3, atol=1e-4), (loss3, ref3)

    print("KERNEL_OK")
</pallas_src>

<mosaic_0001>
module attributes {stable_mosaic.version = 11 : i64} {
  func.func @_nll_kernel(%arg0: i32, %arg1: i32, %arg2: memref<8x128xf32, #tpu.memory_space<vmem>>, %arg3: memref<8x128xf32, #tpu.memory_space<vmem>>, %arg4: memref<8x128xf32, #tpu.memory_space<vmem>>) attributes {dimension_semantics = [#tpu.dimension_semantics<parallel>, #tpu.dimension_semantics<arbitrary>], iteration_bounds = array<i64: 2, 1>, scalar_prefetch = 0 : i64, scratch_operands = 0 : i64, tpu.core_type = #tpu.core_type<tc>, window_params = [{transform_indices = @transform_0, window_bounds = array<i64: 8, 128>}, {transform_indices = @transform_1, window_bounds = array<i64: 8, 128>}, {transform_indices = @transform_2, window_bounds = array<i64: 8, 128>}]} {
    %c1_i32 = arith.constant 1 : i32
    %0 = arith.muli %arg0, %c1_i32 : i32
    %1 = arith.addi %0, %arg1 : i32
    %c0_i32 = arith.constant 0 : i32
    %2 = arith.cmpi eq, %arg1, %c0_i32 : i32
    %3 = arith.extui %2 : i1 to i32
    %c0_i32_0 = arith.constant 0 : i32
    %4 = arith.cmpi ne, %3, %c0_i32_0 : i32
    scf.if %4 {
      %cst_9 = arith.constant 0.000000e+00 : f32
      %20 = vector.broadcast %cst_9 : f32 to vector<8x128xf32>
      %c0_10 = arith.constant 0 : index
      %c0_11 = arith.constant 0 : index
      %21 = vector.load %arg4[%c0_10, %c0_11] : memref<8x128xf32, #tpu.memory_space<vmem>>, vector<8x128xf32>
      tpu.vector_store %arg4[%c0_10, %c0_11], %20 {strides = array<i32>} : memref<8x128xf32, #tpu.memory_space<vmem>>, vector<8x128xf32>,
    } else {
    }
    %c0 = arith.constant 0 : index
    %c0_1 = arith.constant 0 : index
    %5 = vector.load %arg2[%c0, %c0_1] : memref<8x128xf32, #tpu.memory_space<vmem>>, vector<8x128xf32>
    %c0_2 = arith.constant 0 : index
    %c0_3 = arith.constant 0 : index
    %6 = vector.load %arg3[%c0_2, %c0_3] : memref<8x128xf32, #tpu.memory_space<vmem>>, vector<8x128xf32>
    %cst = arith.constant 1.000000e-15 : f32
    %7 = vector.broadcast %cst : f32 to vector<8x128xf32>
    %8 = arith.addf %5, %7 : vector<8x128xf32>
    %cst_4 = arith.constant 1.000000e+00 : f32
    %9 = vector.broadcast %cst_4 : f32 to vector<8x128xf32>
    %10 = arith.subf %9, %6 : vector<8x128xf32>
    %cst_5 = arith.constant 1.000000e-15 : f32
    %11 = vector.broadcast %cst_5 : f32 to vector<8x128xf32>
    %12 = arith.addf %10, %11 : vector<8x128xf32>
    %13 = arith.mulf %8, %12 : vector<8x128xf32>
    %14 = math.log %13 : vector<8x128xf32>
    %cst_6 = arith.constant 0.000000e+00 : f32
    %15 = vector.broadcast %cst_6 : f32 to vector<8x128xf32>
    %16 = arith.subf %15, %14 : vector<8x128xf32>
    %c1_i32_7 = arith.constant 1 : i32
    %17 = arith.cmpi slt, %1, %c1_i32_7 : i32
    %18 = arith.extui %17 : i1 to i32
    %c0_i32_8 = arith.constant 0 : i32
    %19 = arith.cmpi ne, %18, %c0_i32_8 : i32
    scf.if %19 {
      %c0_9 = arith.constant 0 : index
      %c0_10 = arith.constant 0 : index
      %20 = vector.load %arg4[%c0_9, %c0_10] : memref<8x128xf32, #tpu.memory_space<vmem>>, vector<8x128xf32>
      %21 = vector.shape_cast %16 : vector<8x128xf32> to vector<1x8x128xf32>
      %cst_11 = arith.constant dense<0.000000e+00> : vector<8x128xf32>
      %22 = vector.multi_reduction <add>, %21, %cst_11 [0] : vector<1x8x128xf32> to vector<8x128xf32>
      %23 = arith.addf %20, %22 : vector<8x128xf32>
      %c0_12 = arith.constant 0 : index
      %c0_13 = arith.constant 0 : index
      %24 = vector.load %arg4[%c0_12, %c0_13] : memref<8x128xf32, #tpu.memory_space<vmem>>, vector<8x128xf32>
      tpu.vector_store %arg4[%c0_12, %c0_13], %23 {strides = array<i32>} : memref<8x128xf32, #tpu.memory_space<vmem>>, vector<8x128xf32>,
    } else {
    }
    return
  }
  func.func @transform_0(%arg0: i32, %arg1: i32) -> (i32, i32) {
    %c1_i32 = arith.constant 1 : i32
    %0 = arith.muli %arg0, %c1_i32 : i32
    %1 = arith.addi %0, %arg1 : i32
    %c0_i32 = arith.constant 0 : i32
    %2 = arith.minsi %1, %c0_i32 : i32
    %c0_i32_0 = arith.constant 0 : i32
    %c0_i32_1 = arith.constant 0 : i32
    return %2, %c0_i32_0 : i32, i32
  }
  func.func @transform_1(%arg0: i32, %arg1: i32) -> (i32, i32) {
    %c1_i32 = arith.constant 1 : i32
    %0 = arith.muli %arg0, %c1_i32 : i32
    %1 = arith.addi %0, %arg1 : i32
    %c0_i32 = arith.constant 0 : i32
    %2 = arith.minsi %1, %c0_i32 : i32
    %c0_i32_0 = arith.constant 0 : i32
    %c0_i32_1 = arith.constant 0 : i32
    return %2, %c0_i32_0 : i32, i32
  }
  func.func @transform_2(%arg0: i32, %arg1: i32) -> (i32, i32) {
    %c0_i32 = arith.constant 0 : i32
    %c0_i32_0 = arith.constant 0 : i32
    return %arg0, %c0_i32 : i32, i32
  }
}

</mosaic_0001>

<llo_original>
// kernel: tpu_custom_call.1
$region0: #{tpu_custom_call.1}
  #allocation0 [shape = 'u32[]', space=smem, size = 0x4, offset = 0x4, fixed_abs, tag = 'smem constant byte address 0x4 - core index']
  #allocation1 [shape = 'u32[144,128]{1,0:T(1,128)}', space=vmem, size = 0x12000, scoped, tag = 'internal scratch']
  %s0 = inlined_call_operand.hbm [shape: f32[8,128], index: 0, kind: input, shape index: {}]
  %s1 = inlined_call_operand.hbm [shape: f32[8,128], index: 1, kind: input, shape index: {}]
  %s2 = inlined_call_operand.hbm [shape: f32[16,128], index: 2, kind: output, shape index: {}]
  %s3 = sld [smem:[#allocation0]]
  $region57: #{tpu_custom_call.1} parent=0
    _
  %s5 = ssub.s32 1, %s3
  %s6 = scalar_select 0, %s5, %s3
  $region1: #{tpu_custom_call.1} parent=0
    #allocation2 [shape = 'u8[8192]{0}', space=vmem, size = 0x2000, scoped, tag = 'input window, operand 0']
    #allocation3 [shape = 's32[2]{0}', space=sflag, size = 0x8, scoped, tag = 'scoped memory for tpu_custom_call.1']
    #allocation4 [shape = 's32[2]{0}', space=sflag, size = 0x8, scoped, tag = 'scoped memory for tpu_custom_call.1']
    #allocation5 [shape = 'u8[8192]{0}', space=vmem, size = 0x2000, scoped, tag = 'input window, operand 1']
    #allocation6 [shape = 's32[2]{0}', space=sflag, size = 0x8, scoped, tag = 'scoped memory for tpu_custom_call.1']
    #allocation7 [shape = 'u8[8192]{0}', space=vmem, size = 0x2000, scoped, tag = 'output window, operand 0']
    %7 = vsyncpa [#allocation3], 0
    %s8 = scalar_lea.sflag [#allocation3], 1
    %9 = vsyncpa %s8, 0
    %10 = vsyncpa [#allocation6], 0
    %s11 = scalar_lea.sflag [#allocation6], 1
    %12 = vsyncpa %s11, 0
    %13 = vsyncpa [#allocation4], 0
    %s14 = scalar_lea.sflag [#allocation4], 1
    %15 = vsyncpa %s14, 0
    loop: start=0, step=1, limit=4
    $region2: #{tpu_custom_call.1} parent=1 // loop_pre_header
      _
    $region3: #{tpu_custom_call.1} parent=1 // loop_header
      %s17 = sphi 0, %s21
      %p18 = scmp.ge.s32.totalorder %s17, 4
      %s24 = sphi 0, %s36
      %s25 = sphi 0, %s32
      %s26 = sphi 0, %s24
      %s27 = sphi 0, %s25
      %s28 = sphi 0, %s26
      %s29 = sphi 0, %s27
      %s45 = sphi 0, %s47
      %s48 = sphi 0, %s45
      %s49 = sphi 0, %s48
      %s65 = sphi 0, %s49
      %s77 = sphi 0, %s79
      %s80 = sphi 0, %s77
      %s81 = sphi 0, %s80
      %s97 = sphi 0, %s81
      %s103 = sphi 0, %s105
      %s106 = sphi 0, %s103
      %s107 = sphi 0, %s106
      %s123 = sphi 0, %s107
    $region4: #{tpu_custom_call.1} parent=1 // loop_header_branch
      %20 = sbr.rel (%p18) target = $region8
    $region5: #{tpu_custom_call.1} parent=1 // loop_body
      %s22 = ssub.s32 %s17, 1
      %s23 = ssub.s32 %s17, 2
      %s30 = sadd.s32 1, %s25
      %p31 = scmp.ge.s32.totalorder %s30, 1
      %s32 = scalar_select %p31, 0, %s30
      %s33 = sadd.s32 1, %s24
      %s34 = scalar_select %p31, %s33, %s24
      %p35 = scmp.ge.s32.totalorder %s34, 2
      %s36 = scalar_select %p35, 0, %s34
      %s37 = sadd.s32 %s24, %s25
      %p38 = scmp.lt.s32.totalorder %s37, 0
      %s39 = scalar_select %p38, %s37, 0
      %s40 = sadd.s32 %s36, %s32
      %p41 = scmp.lt.s32.totalorder %s40, 0
      %s42 = scalar_select %p41, %s40, 0
      %s43 = ssub.s32 %s39, %s42
      %p44 = scmp.eq.s32.totalorder %s43, 0
      %s46 = sadd.s32 %s45, 1
      %s47 = scalar_select %p44, %s45, %s46
      %p50 = pneg %p44
      %p51 = scmp.eq.s32.totalorder %s17, 1
      %p52 = por %p50, %p51
      %p53 = scmp.ne.s32.totalorder %s45, %s48
      %p54 = scmp.eq.s32.totalorder %s17, 0
      %p55 = por %p53, %p54
      %p56 = scmp.ne.s32.totalorder %s45, %s48
      %p57 = scmp.eq.s32.totalorder %s22, 1
      %p58 = por %p56, %p57
      %p59 = scmp.ne.s32.totalorder %s48, %s49
      %p60 = scmp.eq.s32.totalorder %s22, 0
      %p61 = por %p59, %p60
      %p62 = scmp.ne.s32.totalorder %s48, %s49
      %p63 = scmp.eq.s32.totalorder %s23, 1
      %p64 = por %p62, %p63
      %p66 = scmp.ne.s32.totalorder %s49, %s65
      %p67 = scmp.eq.s32.totalorder %s23, 0
      %p68 = por %p66, %p67
      %s69 = sadd.s32 %s24, %s25
      %p70 = scmp.lt.s32.totalorder %s69, 0
      %s71 = scalar_select %p70, %s69, 0
      %s72 = sadd.s32 %s36, %s32
      %p73 = scmp.lt.s32.totalorder %s72, 0
      %s74 = scalar_select %p73, %s72, 0
      %s75 = ssub.s32 %s71, %s74
      %p76 = scmp.eq.s32.totalorder %s75, 0
      %s78 = sadd.s32 %s77, 1
      %s79 = scalar_select %p76, %s77, %s78
      %p82 = pneg %p76
      %p83 = scmp.eq.s32.totalorder %s17, 1
      %p84 = por %p82, %p83
      %p85 = scmp.ne.s32.totalorder %s77, %s80
      %p86 = scmp.eq.s32.totalorder %s17, 0
      %p87 = por %p85, %p86
      %p88 = scmp.ne.s32.totalorder %s77, %s80
      %p89 = scmp.eq.s32.totalorder %s22, 1
      %p90 = por %p88, %p89
      %p91 = scmp.ne.s32.totalorder %s80, %s81
      %p92 = scmp.eq.s32.totalorder %s22, 0
      %p93 = por %p91, %p92
      %p94 = scmp.ne.s32.totalorder %s80, %s81
      %p95 = scmp.eq.s32.totalorder %s23, 1
      %p96 = por %p94, %p95
      %p98 = scmp.ne.s32.totalorder %s81, %s97
      %p99 = scmp.eq.s32.totalorder %s23, 0
      %p100 = por %p98, %p99
      %s101 = ssub.s32 %s24, %s36
      %p102 = scmp.eq.s32.totalorder %s101, 0
      %s104 = sadd.s32 %s103, 1
      %s105 = scalar_select %p102, %s103, %s104
      %p108 = pneg %p102
      %p109 = scmp.eq.s32.totalorder %s17, 1
      %p110 = por %p108, %p109
      %p111 = scmp.ne.s32.totalorder %s103, %s106
      %p112 = scmp.eq.s32.totalorder %s17, 0
      %p113 = por %p111, %p112
      %p114 = scmp.ne.s32.totalorder %s103, %s106
      %p115 = scmp.eq.s32.totalorder %s22, 1
      %p116 = por %p114, %p115
      %p117 = scmp.ne.s32.totalorder %s106, %s107
      %p118 = scmp.eq.s32.totalorder %s22, 0
      %p119 = por %p117, %p118
      %p120 = scmp.ne.s32.totalorder %s106, %s107
      %p121 = scmp.eq.s32.totalorder %s23, 1
      %p122 = por %p120, %p121
      %p124 = scmp.ne.s32.totalorder %s107, %s123
      %p125 = scmp.eq.s32.totalorder %s23, 0
      %p126 = por %p124, %p125
      %p127 = scmp.le.s32.totalorder 1, %s17
      %p128 = scmp.lt.s32.totalorder %s17, 3
      %p129 = pnand %p127, %p128
      %p130 = pneg %p129
      // Predicated region
      $region9: #{tpu_custom_call.1} parent=5 // pred_check
        _
      $region10: #{tpu_custom_call.1} parent=5 // pred_check_branch
        %132 = sbr.rel (%p129) target = $region12
      $region11: #{tpu_custom_call.1} parent=5 // pred_region
        %s133 = ssub.s32 %s17, 1
      $region12: #{tpu_custom_call.1} parent=5 // pred_fallthru
        _
      %p134 = scmp.lt.s32.totalorder %s17, 2
      // Predicated region
      $region13: #{tpu_custom_call.1} parent=5 // pred_check
        %p135 = pneg %p134
      $region14: #{tpu_custom_call.1} parent=5 // pred_check_branch
        %137 = sbr.rel (%p135) target = $region16
      $region15: #{tpu_custom_call.1} parent=5 // pred_region
        // Predicated region
        $region17: #{tpu_custom_call.1} parent=15 // pred_check
          %p138 = pneg %p55
        $region18: #{tpu_custom_call.1} parent=15 // pred_check_branch
          %140 = sbr.rel (%p138) target = $region20
        $region19: #{tpu_custom_call.1} parent=15 // pred_region
          %s141 = sand.u32 %s45, 1
          %s142 = scalar_lea.sflag [#allocation3], %s141
          %s143 = sand.u32 %s45, 1
          %s144 = smul.addr %s143, 8
          %s145 = scalar_lea.vmem [#allocation2], %s144
          %s146 = sadd.s32 %s24, %s25
          %p147 = scmp.lt.s32.totalorder %s146, 0
          %s148 = scalar_select %p147, %s146, 0
          %s150 = ssub.s32 128, 128
          %151 = vsyncadd %s142, %s150
          %s152 = smul.addr %s148, 128
          %s153 = scalar_lea.hbm %s0, %s152
          %s155 = sshll.u32 %s145, 4
          %s156 = int_to_ptr.vmem [resolvable:$true] %s155
          %158 = dma.hbm_to_vmem [thread:$0]  %s153, 128, %s156, %s142
        $region20: #{tpu_custom_call.1} parent=15 // pred_fallthru
          _
        // Predicated region
        $region21: #{tpu_custom_call.1} parent=15 // pred_check
          %p159 = pneg %p87
        $region22: #{tpu_custom_call.1} parent=15 // pred_check_branch
          %161 = sbr.rel (%p159) target = $region24
        $region23: #{tpu_custom_call.1} parent=15 // pred_region
          %s162 = sand.u32 %s77, 1
          %s163 = scalar_lea.sflag [#allocation6], %s162
          %s164 = sand.u32 %s77, 1
          %s165 = smul.addr %s164, 8
          %s166 = scalar_lea.vmem [#allocation5], %s165
          %s167 = sadd.s32 %s24, %s25
          %p168 = scmp.lt.s32.totalorder %s167, 0
          %s169 = scalar_select %p168, %s167, 0
          %s171 = ssub.s32 128, 128
          %172 = vsyncadd %s163, %s171
          %s173 = smul.addr %s169, 128
          %s174 = scalar_lea.hbm %s1, %s173
          %s176 = sshll.u32 %s166, 4
          %s177 = int_to_ptr.vmem [resolvable:$true] %s176
          %179 = dma.hbm_to_vmem [thread:$0]  %s174, 128, %s177, %s163
        $region24: #{tpu_custom_call.1} parent=15 // pred_fallthru
          _
      $region16: #{tpu_custom_call.1} parent=5 // pred_fallthru
        _
      %p180 = scmp.le.s32.totalorder 1, %s17
      %p181 = scmp.lt.s32.totalorder %s17, 3
      %p182 = pnand %p180, %p181
      %p183 = pneg %p182
      // Predicated region
      $region25: #{tpu_custom_call.1} parent=5 // pred_check
        _
      $region26: #{tpu_custom_call.1} parent=5 // pred_check_branch
        %185 = sbr.rel (%p182) target = $region28
      $region27: #{tpu_custom_call.1} parent=5 // pred_region
        %s186 = ssub.s32 %s17, 1
        %s187 = sand.u32 %s48, 1
        %s188 = scalar_lea.sflag [#allocation3], %s187
        %s189 = sand.u32 %s48, 1
        %s190 = smul.addr %s189, 8
        %s191 = scalar_lea.vmem [#allocation2], %s190
        // Predicated region
        $region29: #{tpu_custom_call.1} parent=27 // pred_check
          %p192 = pneg %p61
        $region30: #{tpu_custom_call.1} parent=27 // pred_check_branch
          %194 = sbr.rel (%p192) target = $region32
        $region31: #{tpu_custom_call.1} parent=27 // pred_region
          %195 = dma.done %s188, 128
        $region32: #{tpu_custom_call.1} parent=27 // pred_fallthru
          _
        %s196 = sand.u32 %s80, 1
        %s197 = scalar_lea.sflag [#allocation6], %s196
        %s198 = sand.u32 %s80, 1
        %s199 = smul.addr %s198, 8
        %s200 = scalar_lea.vmem [#allocation5], %s199
        // Predicated region
        $region33: #{tpu_custom_call.1} parent=27 // pred_check
          %p201 = pneg %p93
        $region34: #{tpu_custom_call.1} parent=27 // pred_check_branch
          %203 = sbr.rel (%p201) target = $region36
        $region35: #{tpu_custom_call.1} parent=27 // pred_region
          %204 = dma.done %s197, 128
        $region36: #{tpu_custom_call.1} parent=27 // pred_fallthru
          _
        %s205 = sand.u32 %s48, 1
        %s206 = scalar_lea.sflag [#allocation3], %s205
        %s207 = sand.u32 %s48, 1
        %s208 = smul.addr %s207, 8
        %s209 = scalar_lea.vmem [#allocation2], %s208
        %p210 = pneg %p61
        %p211 = pneg %p58
        %s212 = sand.u32 %s80, 1
        %s213 = scalar_lea.sflag [#allocation6], %s212
        %s214 = sand.u32 %s80, 1
        %s215 = smul.addr %s214, 8
        %s216 = scalar_lea.vmem [#allocation5], %s215
        %p217 = pneg %p93
        %p218 = pneg %p90
        %p219 = pneg %p119
        %p220 = pneg %p116
        %s221 = sand.u32 %s106, 1
        %s222 = scalar_lea.sflag [#allocation4], %s221
        %s223 = sand.u32 %s106, 1
        %s224 = smul.addr %s223, 8
        %s225 = scalar_lea.vmem [#allocation7], %s224
        %s226 = sadd.s32 %s26, %s27
        %p227 = scmp.lt.s32.totalorder %s226, 0
        %s228 = scalar_select %p227, %s226, 0
        %s229 = sadd.s32 %s26, %s27
        %p230 = scmp.lt.s32.totalorder %s229, 0
        %s231 = scalar_select %p230, %s229, 0
        %s232 = sadd.s32 %s26, %s27
        %p233 = scmp.eq.s32.totalorder %s27, 0
        // Predicated region
        $region37: #{tpu_custom_call.1} parent=27 // pred_check
          %p234 = pneg %p233
        $region38: #{tpu_custom_call.1} parent=27 // pred_check_branch
          %236 = sbr.rel (%p234) target = $region40
        $region39: #{tpu_custom_call.1} parent=27 // pred_region
          %237 = vst [vmem:[%s225] sm:$0xff] 0.0
        $region40: #{tpu_custom_call.1} parent=27 // pred_fallthru
          _
        %v238 = vld [vmem:[%s191] sm:$0xff]
        %v239 = vld [vmem:[%s200] sm:$0xff]
        %v240 = vadd.f32 %v238, 1e-15
        %v241 = vsub.f32 1.0, %v239
        %v242 = vadd.f32 %v241, 1e-15
        %v243 = vmul.f32 %v240, %v242
        %v244 = vlog2.pop %v243
        %v245 = vmul.f32 %v244, 0.6931472
        %v246 = vsub.f32 0.0, %v245
        %p247 = scmp.lt.s32.totalorder %s232, 1
        // Predicated region
        $region41: #{tpu_custom_call.1} parent=27 // pred_check
          %p248 = pneg %p247
        $region42: #{tpu_custom_call.1} parent=27 // pred_check_branch
          %250 = sbr.rel (%p248) target = $region44
        $region43: #{tpu_custom_call.1} parent=27 // pred_region
          %v251 = vld [vmem:[%s225] sm:$0xff]
          %v252 = vadd.f32 %v246, 0.0
          %v253 = vadd.f32 %v251, %v252
          %254 = vst [vmem:[%s225] sm:$0xff] %v253
        $region44: #{tpu_custom_call.1} parent=27 // pred_fallthru
          _
        %s255 = sand.u32 %s106, 1
        %s256 = scalar_lea.sflag [#allocation4], %s255
        %s257 = sand.u32 %s106, 1
        %s258 = smul.addr %s257, 8
        %s259 = scalar_lea.vmem [#allocation7], %s258
        // Predicated region
        $region45: #{tpu_custom_call.1} parent=27 // pred_check
          %p260 = pneg %p116
        $region46: #{tpu_custom_call.1} parent=27 // pred_check_branch
          %262 = sbr.rel (%p260) target = $region48
        $region47: #{tpu_custom_call.1} parent=27 // pred_region
          %s264 = ssub.s32 128, 128
          %265 = vsyncadd %s256, %s264
          %s266 = smul.addr %s26, 128
          %s267 = scalar_lea.hbm %s2, %s266
          %s269 = sshll.u32 %s259, 4
          %s270 = int_to_ptr.vmem [resolvable:$true] %s269
          %272 = dma.vmem_to_hbm [thread:$0]  %s270, 128, %s267, %s256
        $region48: #{tpu_custom_call.1} parent=27 // pred_fallthru
          _
      $region28: #{tpu_custom_call.1} parent=5 // pred_fallthru
        _
      %p273 = scmp.le.s32.totalorder 2, %s17
      // Predicated region
      $region49: #{tpu_custom_call.1} parent=5 // pred_check
        %p274 = pneg %p273
      $region50: #{tpu_custom_call.1} parent=5 // pred_check_branch
        %276 = sbr.rel (%p274) target = $region52
      $region51: #{tpu_custom_call.1} parent=5 // pred_region
        %s277 = ssub.s32 %s17, 2
        // Predicated region
        $region53: #{tpu_custom_call.1} parent=51 // pred_check
          %p278 = pneg %p122
        $region54: #{tpu_custom_call.1} parent=51 // pred_check_branch
          %280 = sbr.rel (%p278) target = $region56
        $region55: #{tpu_custom_call.1} parent=51 // pred_region
          %s281 = sand.u32 %s107, 1
          %s282 = scalar_lea.sflag [#allocation4], %s281
          %s283 = sand.u32 %s107, 1
          %s284 = smul.addr %s283, 8
          %s285 = scalar_lea.vmem [#allocation7], %s284
          %286 = dma.done %s282, 128
        $region56: #{tpu_custom_call.1} parent=51 // pred_fallthru
          _
      $region52: #{tpu_custom_call.1} parent=5 // pred_fallthru
        _
    $region6: #{tpu_custom_call.1} parent=1 // loop_footer
      %s21 = sadd.s32 1, %s17
    $region7: #{tpu_custom_call.1} parent=1 // loop_footer_branch
      %16 = sbr.rel target = $region3
    $region8: #{tpu_custom_call.1} parent=1 // loop_exit
      _
    %287 = vsyncpa [#allocation3], 1
    %s288 = scalar_lea.sflag [#allocation3], 1
    %289 = vsyncpa %s288, 1
    %290 = vsyncpa [#allocation6], 1
    %s291 = scalar_lea.sflag [#allocation6], 1
    %292 = vsyncpa %s291, 1
    %293 = vsyncpa [#allocation4], 1
    %s294 = scalar_lea.sflag [#allocation4], 1
    %295 = vsyncpa %s294, 1

</llo_original>
